<compile_context>
chip_gen: v6e
topology: v6e:2x2x1
jax: 0.10.0
libtpu: 0.0.40
codegen_flags: <defaults>
</compile_context>

<pallas_src>
import functools

import jax
import jax.numpy as jnp
from jax.experimental import pallas as pl
from jax.experimental.pallas import tpu as pltpu


def _recon_loss_kernel(w_ref, pred_ref, true_ref, out_ref, *,
                       block_rows, tail_rows):
    """Grid step i fully reduces one (block_rows, F) slab to out[i].

    w_ref    : (8, F) f32 sublane-replicated border-weight map (resident).
    pred/true: (block_rows, F) slabs of the flattened inputs.
    out_ref  : (1, 1) f32 SMEM block of the (grid, 1) partial-sum output.
    """
    i = pl.program_id(0)
    last = pl.num_programs(0) - 1

    def write_partial(valid_rows):
        diff = pred_ref[...].astype(jnp.float32) - true_ref[...].astype(jnp.float32)
        sq = diff * diff
        if valid_rows < block_rows:
            # Only emitted for the ragged-tail path (executed once, last step).
            row = jax.lax.broadcasted_iota(jnp.int32, (block_rows, 1), 0)
            sq = jnp.where(row < valid_rows, sq, jnp.float32(0.0))
        # Collapse rows 8 at a time with plain vreg adds; the weight multiply
        # and the cross-lane reduce only touch the small (8, F) accumulator.
        cols = jnp.sum(sq.reshape(block_rows // 8, 8, sq.shape[-1]), axis=0)
        out_ref[0, 0] = jnp.sum(cols * w_ref[...])

    if tail_rows == block_rows:            # static: no ragged tail anywhere
        write_partial(block_rows)
    else:
        @pl.when(i != last)
        def _():                            # unmasked fast path
            write_partial(block_rows)

        @pl.when(i == last)
        def _():                            # masked tail path (runs once)
            write_partial(tail_rows)


def _vmem_capacity_bytes():
    try:
        info = pltpu.get_tpu_info()
        cap = getattr(info, "vmem_capacity_bytes", None)
        if cap:
            return int(cap)
    except Exception:
        pass
    return 128 << 20


def reconstruction_loss(context_encoder_outputs, true_masked_regions,
                        overlapping_width_px=7, overlapping_weight_factor=10,
                        block_rows=None):
    """Pallas TPU equivalent of ReconstructionLoss.forward; returns scalar f32."""
    N, C, H, W = context_encoder_outputs.shape
    assert true_masked_regions.shape == (N, C, H, W)
    F = C * H * W

    # Lane-dense flattened views (free reshape of contiguous NCHW).
    pred2d = context_encoder_outputs.reshape(N, F)
    true2d = true_masked_regions.reshape(N, F)

    # Border weight map, built with the exact slicing of the PyTorch reference
    # (edge cases like overlap_px == 0 or 2*op >= H match).  Sublane-replicated
    # to (8, F) so the deferred multiply reuses whole vregs (no broadcast).
    op = int(overlapping_width_px)
    mask_hw = jnp.ones((H, W), jnp.float32)
    mask_hw = mask_hw.at[op:-op, op:-op].set(0.0)
    weight_hw = mask_hw * jnp.float32(overlapping_weight_factor) + (1.0 - mask_hw)
    weight = jnp.broadcast_to(weight_hw[None, :, :], (C, H, W)).reshape(1, F)
    weight = jnp.broadcast_to(weight, (8, F)).astype(jnp.float32)

    itemsize = jnp.dtype(pred2d.dtype).itemsize
    row_bytes = F * itemsize
    sub = {1: 32, 2: 16}.get(itemsize, 8)      # sublane packing multiple per dtype

    # Generation-aware slab / VMEM sizing.
    vmem_cap = _vmem_capacity_bytes()
    if vmem_cap <= (64 << 20):                 # v7x-class (64 MiB physical VMEM)
        target_bytes, vmem_cap_limit = 6 << 20, vmem_cap // 2
    else:                                      # v5e / v6e (128 MiB physical VMEM)
        target_bytes, vmem_cap_limit = 8 << 20, 48 << 20

    w_bytes = 8 * F * 4
    n_ceil = ((N + sub - 1) // sub) * sub
    if block_rows is None:
        b = max(sub, (target_bytes // row_bytes) // sub * sub)
        # Keep 2 inputs x 2 pipeline buffers + resident weight under the cap.
        max_tile = (vmem_cap_limit - 2 * w_bytes - (2 << 20)) // 4
        if max_tile >= row_bytes * sub:
            b = min(b, max(sub, (max_tile // row_bytes) // sub * sub))
        block_rows = min(b, n_ceil)
    else:
        block_rows = max(8, ((int(block_rows) + 7) // 8) * 8)

    grid = pl.cdiv(N, block_rows)
    tail_rows = N - (grid - 1) * block_rows    # static; == block_rows if no tail

    tile_bytes = block_rows * row_bytes
    vmem_limit = int(min(max(4 * tile_bytes + 2 * w_bytes + (2 << 20), 16 << 20),
                         vmem_cap_limit))

    kernel = functools.partial(_recon_loss_kernel,
                               block_rows=block_rows, tail_rows=tail_rows)

    cost = pl.CostEstimate(
        flops=3 * N * F, transcendentals=0,
        bytes_accessed=int(2 * N * F * itemsize + w_bytes + grid * 4))

    partials = pl.pallas_call(
        kernel,
        out_shape=jax.ShapeDtypeStruct((grid, 1), jnp.float32),
        grid_spec=pltpu.PrefetchScalarGridSpec(
            num_scalar_prefetch=0,
            grid=(grid,),
            in_specs=[
                pl.BlockSpec((8, F), lambda i: (0, 0)),             # weight (resident)
                pl.BlockSpec((block_rows, F), lambda i: (i, 0)),    # pred slab
                pl.BlockSpec((block_rows, F), lambda i: (i, 0)),    # true slab
            ],
            out_specs=pl.BlockSpec((1, 1), lambda i: (i, 0),
                                   memory_space=pltpu.SMEM),
        ),
        compiler_params=pltpu.CompilerParams(
            dimension_semantics=("parallel",),
            vmem_limit_bytes=vmem_limit,
        ),
        cost_estimate=cost,
    )(weight, pred2d, true2d)

    return jnp.sum(partials) * jnp.float32(1.0 / float(N * C * H * W))


def _reference_loss(pred, true, overlap_px=7, factor=10):
    """Pure-JAX reference matching the PyTorch forward exactly."""
    mask = jnp.ones_like(true)
    mask = mask.at[:, :, overlap_px:-overlap_px, overlap_px:-overlap_px].set(0)
    diff = pred - true
    l2_overlap = jnp.mean((diff * mask) ** 2, axis=(1, 2, 3))
    l2_non = jnp.mean((diff * (1 - mask)) ** 2, axis=(1, 2, 3))
    return jnp.mean(l2_overlap * factor + l2_non)


if __name__ == "__main__":
    key = jax.random.PRNGKey(0)
    k1, k2, k3, k4 = jax.random.split(key, 4)

    # Small NCHW inputs consistent with the module (inpainting patches).
    pred = jax.random.normal(k1, (2, 3, 16, 16), dtype=jnp.float32)
    true = jax.random.normal(k2, (2, 3, 16, 16), dtype=jnp.float32)
    loss = jax.block_until_ready(
        reconstruction_loss(pred, true,
                            overlapping_width_px=7,
                            overlapping_weight_factor=10))
    ref = jax.block_until_ready(_reference_loss(pred, true, 7, 10))
    assert jnp.allclose(loss, ref, rtol=1e-5, atol=1e-5), (loss, ref)

    # Exercise multi-block + parallel partials + ragged tail (N % block_rows != 0).
    pred2 = jax.random.normal(k3, (20, 3, 16, 16), dtype=jnp.float32)
    true2 = jax.random.normal(k4, (20, 3, 16, 16), dtype=jnp.float32)
    loss2 = jax.block_until_ready(
        reconstruction_loss(pred2, true2, 7, 10, block_rows=8))
    ref2 = jax.block_until_ready(_reference_loss(pred2, true2, 7, 10))
    assert jnp.allclose(loss2, ref2, rtol=1e-5, atol=1e-5), (loss2, ref2)

    print("KERNEL_OK")
</pallas_src>

<mosaic_0001>
module attributes {stable_mosaic.version = 11 : i64} {
  func.func @_recon_loss_kernel(%arg0: i32, %arg1: memref<8x768xf32, #tpu.memory_space<vmem>>, %arg2: memref<8x768xf32, #tpu.memory_space<vmem>>, %arg3: memref<8x768xf32, #tpu.memory_space<vmem>>, %arg4: memref<1x1xf32, #tpu.memory_space<smem>>) attributes {dimension_semantics = [#tpu.dimension_semantics<parallel>], iteration_bounds = array<i64: 1>, scalar_prefetch = 0 : i64, scratch_operands = 0 : i64, tpu.core_type = #tpu.core_type<tc>, window_params = [{pipeline_mode = #tpu.pipeline_mode<synchronous>, transform_indices = @transform_0, window_bounds = array<i64: 8, 768>}, {transform_indices = @transform_1, window_bounds = array<i64: 8, 768>}, {transform_indices = @transform_2, window_bounds = array<i64: 8, 768>}, {transform_indices = @transform_3, window_bounds = array<i64: 1, 1>}]} {
    %c0_i32 = arith.constant 0 : i32
    %0 = arith.cmpi ne, %arg0, %c0_i32 : i32
    %1 = arith.extui %0 : i1 to i32
    %c0_i32_0 = arith.constant 0 : i32
    %2 = arith.cmpi ne, %1, %c0_i32_0 : i32
    scf.if %2 {
      %c0 = arith.constant 0 : index
      %c0_3 = arith.constant 0 : index
      %6 = vector.load %arg2[%c0, %c0_3] : memref<8x768xf32, #tpu.memory_space<vmem>>, vector<8x768xf32>
      %c0_4 = arith.constant 0 : index
      %c0_5 = arith.constant 0 : index
      %7 = vector.load %arg3[%c0_4, %c0_5] : memref<8x768xf32, #tpu.memory_space<vmem>>, vector<8x768xf32>
      %8 = arith.subf %6, %7 : vector<8x768xf32>
      %9 = arith.mulf %8, %8 : vector<8x768xf32>
      %10 = vector.shape_cast %9 : vector<8x768xf32> to vector<1x8x768xf32>
      %cst = arith.constant dense<0.000000e+00> : vector<8x768xf32>
      %11 = vector.multi_reduction <add>, %10, %cst [0] : vector<1x8x768xf32> to vector<8x768xf32>
      %c0_6 = arith.constant 0 : index
      %c0_7 = arith.constant 0 : index
      %12 = vector.load %arg1[%c0_6, %c0_7] : memref<8x768xf32, #tpu.memory_space<vmem>>, vector<8x768xf32>
      %13 = arith.mulf %11, %12 : vector<8x768xf32>
      %14 = vector.shape_cast %13 : vector<8x768xf32> to vector<1x8x768xf32>
      %cst_8 = arith.constant dense<0.000000e+00> : vector<1xf32>
      %15 = vector.multi_reduction <add>, %14, %cst_8 [1, 2] : vector<1x8x768xf32> to vector<1xf32>
      %16 = vector.shape_cast %15 : vector<1xf32> to vector<1x1x1xf32>
      %17 = vector.extract %16[0, 0, 0] : f32 from vector<1x1x1xf32>
      %c0_9 = arith.constant 0 : index
      %c0_10 = arith.constant 0 : index
      %18 = memref.load %arg4[%c0_9, %c0_10] : memref<1x1xf32, #tpu.memory_space<smem>>
      memref.store %17, %arg4[%c0_9, %c0_10] : memref<1x1xf32, #tpu.memory_space<smem>>
    } else {
    }
    %c0_i32_1 = arith.constant 0 : i32
    %3 = arith.cmpi eq, %arg0, %c0_i32_1 : i32
    %4 = arith.extui %3 : i1 to i32
    %c0_i32_2 = arith.constant 0 : i32
    %5 = arith.cmpi ne, %4, %c0_i32_2 : i32
    scf.if %5 {
      %c0 = arith.constant 0 : index
      %c0_3 = arith.constant 0 : index
      %6 = vector.load %arg2[%c0, %c0_3] : memref<8x768xf32, #tpu.memory_space<vmem>>, vector<8x768xf32>
      %c0_4 = arith.constant 0 : index
      %c0_5 = arith.constant 0 : index
      %7 = vector.load %arg3[%c0_4, %c0_5] : memref<8x768xf32, #tpu.memory_space<vmem>>, vector<8x768xf32>
      %8 = arith.subf %6, %7 : vector<8x768xf32>
      %9 = arith.mulf %8, %8 : vector<8x768xf32>
      %10 = tpu.iota {dimensions = array<i32: 0>} : vector<8x1xi32>
      %c2_i32 = arith.constant 2 : i32
      %11 = vector.broadcast %c2_i32 : i32 to vector<8x1xi32>
      %12 = arith.cmpi slt, %10, %11 : vector<8x1xi32>
      %cst = arith.constant 0.000000e+00 : f32
      %13 = vector.shape_cast %12 : vector<8x1xi1> to vector<8x1xi1>
      %14 = vector.broadcast %13 : vector<8x1xi1> to vector<8x768xi1>
      %15 = vector.broadcast %cst : f32 to vector<8x768xf32>
      %16 = arith.select %14, %9, %15 : vector<8x768xi1>, vector<8x768xf32>
      %17 = vector.shape_cast %16 : vector<8x768xf32> to vector<1x8x768xf32>
      %cst_6 = arith.constant dense<0.000000e+00> : vector<8x768xf32>
      %18 = vector.multi_reduction <add>, %17, %cst_6 [0] : vector<1x8x768xf32> to vector<8x768xf32>
      %c0_7 = arith.constant 0 : index
      %c0_8 = arith.constant 0 : index
      %19 = vector.load %arg1[%c0_7, %c0_8] : memref<8x768xf32, #tpu.memory_space<vmem>>, vector<8x768xf32>
      %20 = arith.mulf %18, %19 : vector<8x768xf32>
      %21 = vector.shape_cast %20 : vector<8x768xf32> to vector<1x8x768xf32>
      %cst_9 = arith.constant dense<0.000000e+00> : vector<1xf32>
      %22 = vector.multi_reduction <add>, %21, %cst_9 [1, 2] : vector<1x8x768xf32> to vector<1xf32>
      %23 = vector.shape_cast %22 : vector<1xf32> to vector<1x1x1xf32>
      %24 = vector.extract %23[0, 0, 0] : f32 from vector<1x1x1xf32>
      %c0_10 = arith.constant 0 : index
      %c0_11 = arith.constant 0 : index
      %25 = memref.load %arg4[%c0_10, %c0_11] : memref<1x1xf32, #tpu.memory_space<smem>>
      memref.store %24, %arg4[%c0_10, %c0_11] : memref<1x1xf32, #tpu.memory_space<smem>>
    } else {
    }
    return
  }
  func.func @transform_0(%arg0: i32) -> (i32, i32) {
    %c0_i32 = arith.constant 0 : i32
    %c0_i32_0 = arith.constant 0 : i32
    %c0_i32_1 = arith.constant 0 : i32
    return %c0_i32, %c0_i32_0 : i32, i32
  }
  func.func @transform_1(%arg0: i32) -> (i32, i32) {
    %c0_i32 = arith.constant 0 : i32
    %c0_i32_0 = arith.constant 0 : i32
    return %arg0, %c0_i32 : i32, i32
  }
  func.func @transform_2(%arg0: i32) -> (i32, i32) {
    %c0_i32 = arith.constant 0 : i32
    %c0_i32_0 = arith.constant 0 : i32
    return %arg0, %c0_i32 : i32, i32
  }
  func.func @transform_3(%arg0: i32) -> (i32, i32) {
    %c0_i32 = arith.constant 0 : i32
    %c0_i32_0 = arith.constant 0 : i32
    return %arg0, %c0_i32 : i32, i32
  }
}

</mosaic_0001>

<llo_original>
// kernel: tpu_custom_call.1
$region0: #{tpu_custom_call.1}
  #allocation0 [shape = 'u32[]', space=smem, size = 0x4, offset = 0x4, fixed_abs, tag = 'smem constant byte address 0x4 - core index']
  #allocation1 [shape = 'u32[144,128]{1,0:T(1,128)}', space=vmem, size = 0x12000, scoped, tag = 'internal scratch']
  %s0 = inlined_call_operand.hbm [shape: f32[8,768], index: 0, kind: input, shape index: {}]
  %s1 = inlined_call_operand.hbm [shape: f32[2,768], index: 1, kind: input, shape index: {}]
  %s2 = inlined_call_operand.hbm [shape: f32[2,768], index: 2, kind: input, shape index: {}]
  %s3 = inlined_call_operand.hbm [shape: f32[1,1], index: 3, kind: output, shape index: {}]
  %s4 = sld [smem:[#allocation0]]
  $region42: #{tpu_custom_call.1} parent=0
    _
  %s6 = ssub.s32 1, %s4
  %s7 = scalar_select 0, %s6, %s4
  $region1: #{tpu_custom_call.1} parent=0
    #allocation2 [shape = 'u8[24576]{0}', space=vmem, size = 0x6000, scoped, tag = 'input window, operand 0, single buffered']
    #allocation3 [shape = 's32[1]{0}', space=sflag, size = 0x4, scoped, tag = 'scoped memory for tpu_custom_call.1']
    #allocation4 [shape = 's32[1]{0}', space=sflag, size = 0x4, scoped, tag = 'scoped memory for tpu_custom_call.1']
    #allocation5 [shape = 'u8[24576]{0}', space=vmem, size = 0x6000, scoped, tag = 'input window, operand 1, single buffered']
    #allocation6 [shape = 's32[1]{0}', space=sflag, size = 0x4, scoped, tag = 'scoped memory for tpu_custom_call.1']
    #allocation7 [shape = 'u8[24576]{0}', space=vmem, size = 0x6000, scoped, tag = 'input window, operand 2, single buffered']
    #allocation8 [shape = 'u8[512]{0}', space=smem, size = 0x200, scoped, tag = 'output window, operand 0, single buffered']
    %8 = vsyncpa [#allocation3], 0
    %9 = vsyncpa [#allocation6], 0
    %10 = vsyncpa [#allocation4], 0
    // Predicated region
    $region2: #{tpu_custom_call.1} parent=1 // pred_check
      _
    $region3: #{tpu_custom_call.1} parent=1 // pred_check_branch
      %12 = sbr.rel (0) target = $region5
    $region4: #{tpu_custom_call.1} parent=1 // pred_region
      %s14 = ssub.s32 768, 768
      %15 = vsyncadd [#allocation3], %s14
      %s17 = sshll.u32 [#allocation2], 4
      %s18 = int_to_ptr.vmem [resolvable:$true] %s17
      %20 = dma.hbm_to_vmem [thread:$0]  %s0, 768, %s18, [#allocation3]
    $region5: #{tpu_custom_call.1} parent=1 // pred_fallthru
      _
    // Predicated region
    $region6: #{tpu_custom_call.1} parent=1 // pred_check
      _
    $region7: #{tpu_custom_call.1} parent=1 // pred_check_branch
      %22 = sbr.rel (0) target = $region9
    $region8: #{tpu_custom_call.1} parent=1 // pred_region
      %s24 = ssub.s32 768, 192
      %25 = vsyncadd [#allocation6], %s24
      %s26 = sshll.u32 [#allocation5], 4
      %s27 = int_to_ptr.vmem [resolvable:$true] %s26
      %32 = dma.hbm_to_vmem [thread:$0]  %s1, 192, %s27, [#allocation6], 192, 192, 12
    $region9: #{tpu_custom_call.1} parent=1 // pred_fallthru
      _
    // Predicated region
    $region10: #{tpu_custom_call.1} parent=1 // pred_check
      _
    $region11: #{tpu_custom_call.1} parent=1 // pred_check_branch
      %34 = sbr.rel (0) target = $region13
    $region12: #{tpu_custom_call.1} parent=1 // pred_region
      %s36 = ssub.s32 768, 192
      %37 = vsyncadd [#allocation6], %s36
      %s38 = sshll.u32 [#allocation7], 4
      %s39 = int_to_ptr.vmem [resolvable:$true] %s38
      %44 = dma.hbm_to_vmem [thread:$0]  %s2, 192, %s39, [#allocation6], 192, 192, 12
    $region13: #{tpu_custom_call.1} parent=1 // pred_fallthru
      _
    // Predicated region
    $region14: #{tpu_custom_call.1} parent=1 // pred_check
      _
    $region15: #{tpu_custom_call.1} parent=1 // pred_check_branch
      %46 = sbr.rel (0) target = $region17
    $region16: #{tpu_custom_call.1} parent=1 // pred_region
      %47 = dma.done [#allocation3], 768
    $region17: #{tpu_custom_call.1} parent=1 // pred_fallthru
      _
    // Predicated region
    $region18: #{tpu_custom_call.1} parent=1 // pred_check
      _
    $region19: #{tpu_custom_call.1} parent=1 // pred_check_branch
      %49 = sbr.rel (0) target = $region21
    $region20: #{tpu_custom_call.1} parent=1 // pred_region
      %50 = dma.done [#allocation6], 768
    $region21: #{tpu_custom_call.1} parent=1 // pred_fallthru
      _
    // Predicated region
    $region22: #{tpu_custom_call.1} parent=1 // pred_check
      _
    $region23: #{tpu_custom_call.1} parent=1 // pred_check_branch
      %52 = sbr.rel (0) target = $region25
    $region24: #{tpu_custom_call.1} parent=1 // pred_region
      %53 = dma.done [#allocation6], 768
    $region25: #{tpu_custom_call.1} parent=1 // pred_fallthru
      _
    %p54 = scmp.ne.s32.totalorder 0, 0
    // Predicated region
    $region26: #{tpu_custom_call.1} parent=1 // pred_check
      %p55 = pneg %p54
    $region27: #{tpu_custom_call.1} parent=1 // pred_check_branch
      %57 = sbr.rel (%p55) target = $region29
    $region28: #{tpu_custom_call.1} parent=1 // pred_region
      %v58 = vld [vmem:[#allocation5] sm:$0xff]
      %v59 = vld [vmem:[#allocation5 + $0x8] sm:$0xf]
      %v60 = vld [vmem:[#allocation5 + $0xc] sm:$0xff]
      %v61 = vld [vmem:[#allocation5 + $0x14] sm:$0xf]
      %v62 = vld [vmem:[#allocation5 + $0x18] sm:$0xff]
      %v63 = vld [vmem:[#allocation5 + $0x20] sm:$0xf]
      %v64 = vld [vmem:[#allocation5 + $0x24] sm:$0xff]
      %v65 = vld [vmem:[#allocation5 + $0x2c] sm:$0xf]
      %v66 = vld [vmem:[#allocation7] sm:$0xff]
      %v67 = vld [vmem:[#allocation7 + $0x8] sm:$0xf]
      %v68 = vld [vmem:[#allocation7 + $0xc] sm:$0xff]
      %v69 = vld [vmem:[#allocation7 + $0x14] sm:$0xf]
      %v70 = vld [vmem:[#allocation7 + $0x18] sm:$0xff]
      %v71 = vld [vmem:[#allocation7 + $0x20] sm:$0xf]
      %v72 = vld [vmem:[#allocation7 + $0x24] sm:$0xff]
      %v73 = vld [vmem:[#allocation7 + $0x2c] sm:$0xf]
      %v74 = vsub.f32 %v58, %v66
      %v75 = vsub.f32 %v59, %v67
      %v76 = vsub.f32 %v60, %v68
      %v77 = vsub.f32 %v61, %v69
      %v78 = vsub.f32 %v62, %v70
      %v79 = vsub.f32 %v63, %v71
      %v80 = vsub.f32 %v64, %v72
      %v81 = vsub.f32 %v65, %v73
      %v82 = vmul.f32 %v74, %v74
      %v83 = vmul.f32 %v75, %v75
      %v84 = vmul.f32 %v76, %v76
      %v85 = vmul.f32 %v77, %v77
      %v86 = vmul.f32 %v78, %v78
      %v87 = vmul.f32 %v79, %v79
      %v88 = vmul.f32 %v80, %v80
      %v89 = vmul.f32 %v81, %v81
      %v90 = vadd.f32 %v82, 0.0
      %v91 = vadd.f32 %v83, 0.0
      %v92 = vadd.f32 %v84, 0.0
      %v93 = vadd.f32 %v85, 0.0
      %v94 = vadd.f32 %v86, 0.0
      %v95 = vadd.f32 %v87, 0.0
      %v96 = vadd.f32 %v88, 0.0
      %v97 = vadd.f32 %v89, 0.0
      %v98 = vld [vmem:[#allocation2] sm:$0xff]
      %v99 = vld [vmem:[#allocation2 + $0x8] sm:$0xff]
      %v100 = vld [vmem:[#allocation2 + $0x10] sm:$0xff]
      %v101 = vld [vmem:[#allocation2 + $0x18] sm:$0xff]
      %v102 = vld [vmem:[#allocation2 + $0x20] sm:$0xff]
      %v103 = vld [vmem:[#allocation2 + $0x28] sm:$0xff]
      %v110 = vcombine.low %v98, %v99
      %v111 = vcombine.high %v98, %v99
      %v112 = vcombine.low %v100, %v101
      %v113 = vcombine.high %v100, %v101
      %v115 = vunpack.c.l.s4 1983009808
      %v116 = vunpack.c.0.s8 %v115
      %v117 = vlaneseq
      %v118 = vshrl.u32 %v117, 7
      %v119 = vsub.s32 %v116, %v118
      %v120 = vrot.slane %v110, %v119
      %v122 = vunpack.c.l.s4 1983009808
      %v123 = vunpack.c.0.s8 %v122
      %v124 = vlaneseq
      %v125 = vshrl.u32 %v124, 7
      %v126 = vsub.s32 %v123, %v125
      %v127 = vrot.slane %v111, %v126
      %v129 = vunpack.c.l.s4 1983009808
      %v130 = vunpack.c.0.s8 %v129
      %v131 = vlaneseq
      %v132 = vshrl.u32 %v131, 7
      %v133 = vsub.s32 %v130, %v132
      %v134 = vrot.slane %v112, %v133
      %v136 = vunpack.c.l.s4 1983009808
      %v137 = vunpack.c.0.s8 %v136
      %v138 = vlaneseq
      %v139 = vshrl.u32 %v138, 7
      %v140 = vsub.s32 %v137, %v139
      %v141 = vrot.slane %v113, %v140
      %v142 = vcombine.low %v120, %v134
      %v143 = vcombine.high %v120, %v134
      %v144 = vcombine.low %v127, %v141
      %v145 = vcombine.high %v127, %v141
      %v146 = vcombine.low %v102, %v103
      %v147 = vcombine.high %v102, %v103
      %v149 = vunpack.c.l.s4 1983009808
      %v150 = vunpack.c.0.s8 %v149
      %v151 = vlaneseq
      %v152 = vshrl.u32 %v151, 7
      %v153 = vsub.s32 %v150, %v152
      %v154 = vrot.slane %v146, %v153
      %v156 = vunpack.c.l.s4 1983009808
      %v157 = vunpack.c.0.s8 %v156
      %v158 = vlaneseq
      %v159 = vshrl.u32 %v158, 7
      %v160 = vsub.s32 %v157, %v159
      %v161 = vrot.slane %v147, %v160
      %v162 = vcombine.high %v154, %v154
      %v163 = vcombine.high %v161, %v161
      %v172 = vmul.f32 %v90, %v142
      %v173 = vmul.f32 %v91, %v154
      %v174 = vmul.f32 %v92, %v143
      %v175 = vmul.f32 %v93, %v162
      %v176 = vmul.f32 %v94, %v144
      %v177 = vmul.f32 %v95, %v161
      %v178 = vmul.f32 %v96, %v145
      %v179 = vmul.f32 %v97, %v163
      %v188 = vcombine.low %v172, %v174
      %v189 = vcombine.high %v172, %v174
      %v190 = vcombine.low %v176, %v178
      %v191 = vcombine.high %v176, %v178
      %v193 = vunpack.c.l.s4 1983009808
      %v194 = vunpack.c.0.s8 %v193
      %v195 = vlaneseq
      %v196 = vshrl.u32 %v195, 7
      %v197 = vsub.s32 %v194, %v196
      %v198 = vrot.slane %v188, %v197
      %v200 = vunpack.c.l.s4 1983009808
      %v201 = vunpack.c.0.s8 %v200
      %v202 = vlaneseq
      %v203 = vshrl.u32 %v202, 7
      %v204 = vsub.s32 %v201, %v203
      %v205 = vrot.slane %v189, %v204
      %v207 = vunpack.c.l.s4 1983009808
      %v208 = vunpack.c.0.s8 %v207
      %v209 = vlaneseq
      %v210 = vshrl.u32 %v209, 7
      %v211 = vsub.s32 %v208, %v210
      %v212 = vrot.slane %v190, %v211
      %v214 = vunpack.c.l.s4 1983009808
      %v215 = vunpack.c.0.s8 %v214
      %v216 = vlaneseq
      %v217 = vshrl.u32 %v216, 7
      %v218 = vsub.s32 %v215, %v217
      %v219 = vrot.slane %v191, %v218
      %v220 = vcombine.low %v198, %v212
      %v221 = vcombine.high %v198, %v212
      %v222 = vcombine.low %v205, %v219
      %v223 = vcombine.high %v205, %v219
      %v224 = vcombine.low %v173, %v175
      %v225 = vcombine.low %v177, %v179
      %v227 = vunpack.c.l.s4 1983009808
      %v228 = vunpack.c.0.s8 %v227
      %v229 = vlaneseq
      %v230 = vshrl.u32 %v229, 7
      %v231 = vsub.s32 %v228, %v230
      %v232 = vrot.slane %v224, %v231
      %v234 = vunpack.c.l.s4 1983009808
      %v235 = vunpack.c.0.s8 %v234
      %v236 = vlaneseq
      %v237 = vshrl.u32 %v236, 7
      %v238 = vsub.s32 %v235, %v237
      %v239 = vrot.slane %v225, %v238
      %v240 = vcombine.low %v232, %v239
      %v241 = vcombine.high %v232, %v239
      %v248 = vadd.f32 %v220, %v221
      %v249 = vadd.f32 %v248, %v222
      %v250 = vadd.f32 %v249, %v223
      %v251 = vadd.f32 %v250, %v240
      %v252 = vadd.f32 %v251, %v241
      %253 = vadd.xlane.f32.xlu0 %v252
      %v254 = vpop.xlane.xlu0 %253
      %v255 = vrot.slane %v254, 4
      %v256 = vadd.f32 %v254, %v255
      %v257 = vrot.slane %v256, 2
      %v258 = vadd.f32 %v256, %v257
      %v259 = vrot.slane %v258, 1
      %v260 = vadd.f32 %v258, %v259
      %s261 = vtos %v260
      %s262 = scalar_lea.smem [#allocation8], 0
      %263 = sst [smem:[%s262]] %s261
    $region29: #{tpu_custom_call.1} parent=1 // pred_fallthru
      _
    %p264 = scmp.eq.s32.totalorder 0, 0
    // Predicated region
    $region30: #{tpu_custom_call.1} parent=1 // pred_check
      %p265 = pneg %p264
    $region31: #{tpu_custom_call.1} parent=1 // pred_check_branch
      %267 = sbr.rel (%p265) target = $region33
    $region32: #{tpu_custom_call.1} parent=1 // pred_region
      %v268 = vld [vmem:[#allocation5] sm:$0xff]
      %v269 = vld [vmem:[#allocation5 + $0x8] sm:$0xf]
      %v270 = vld [vmem:[#allocation5 + $0xc] sm:$0xff]
      %v271 = vld [vmem:[#allocation5 + $0x14] sm:$0xf]
      %v272 = vld [vmem:[#allocation5 + $0x18] sm:$0xff]
      %v273 = vld [vmem:[#allocation5 + $0x20] sm:$0xf]
      %v274 = vld [vmem:[#allocation5 + $0x24] sm:$0xff]
      %v275 = vld [vmem:[#allocation5 + $0x2c] sm:$0xf]
      %v276 = vld [vmem:[#allocation7] sm:$0xff]
      %v277 = vld [vmem:[#allocation7 + $0x8] sm:$0xf]
      %v278 = vld [vmem:[#allocation7 + $0xc] sm:$0xff]
      %v279 = vld [vmem:[#allocation7 + $0x14] sm:$0xf]
      %v280 = vld [vmem:[#allocation7 + $0x18] sm:$0xff]
      %v281 = vld [vmem:[#allocation7 + $0x20] sm:$0xf]
      %v282 = vld [vmem:[#allocation7 + $0x24] sm:$0xff]
      %v283 = vld [vmem:[#allocation7 + $0x2c] sm:$0xf]
      %v284 = vsub.f32 %v268, %v276
      %v285 = vsub.f32 %v269, %v277
      %v286 = vsub.f32 %v270, %v278
      %v287 = vsub.f32 %v271, %v279
      %v288 = vsub.f32 %v272, %v280
      %v289 = vsub.f32 %v273, %v281
      %v290 = vsub.f32 %v274, %v282
      %v291 = vsub.f32 %v275, %v283
      %v292 = vmul.f32 %v284, %v284
      %v293 = vmul.f32 %v285, %v285
      %v294 = vmul.f32 %v286, %v286
      %v295 = vmul.f32 %v287, %v287
      %v296 = vmul.f32 %v288, %v288
      %v297 = vmul.f32 %v289, %v289
      %v298 = vmul.f32 %v290, %v290
      %v299 = vmul.f32 %v291, %v291
      %v300 = vlaneseq
      %v301 = vshrl.u32 %v300, 7
      %vm302 = vcmp.lt.s32.totalorder %v301, 2
      %v303 = vsel %vm302, 1, 0
      %vm304 = vcmp.eq.s32.totalorder %v303, 1
      %v313 = vcombine.low %v292, %v294
      %v314 = vcombine.high %v292, %v294
      %v315 = vcombine.low %v296, %v298
      %v316 = vcombine.high %v296, %v298
      %v318 = vunpack.c.l.s4 1983009808
      %v319 = vunpack.c.0.s8 %v318
      %v320 = vlaneseq
      %v321 = vshrl.u32 %v320, 7
      %v322 = vsub.s32 %v319, %v321
      %v323 = vrot.slane %v313, %v322
      %v325 = vunpack.c.l.s4 1983009808
      %v326 = vunpack.c.0.s8 %v325
      %v327 = vlaneseq
      %v328 = vshrl.u32 %v327, 7
      %v329 = vsub.s32 %v326, %v328
      %v330 = vrot.slane %v314, %v329
      %v332 = vunpack.c.l.s4 1983009808
      %v333 = vunpack.c.0.s8 %v332
      %v334 = vlaneseq
      %v335 = vshrl.u32 %v334, 7
      %v336 = vsub.s32 %v333, %v335
      %v337 = vrot.slane %v315, %v336
      %v339 = vunpack.c.l.s4 1983009808
      %v340 = vunpack.c.0.s8 %v339
      %v341 = vlaneseq
      %v342 = vshrl.u32 %v341, 7
      %v343 = vsub.s32 %v340, %v342
      %v344 = vrot.slane %v316, %v343
      %v345 = vcombine.low %v323, %v337
      %v346 = vcombine.high %v323, %v337
      %v347 = vcombine.low %v330, %v344
      %v348 = vcombine.high %v330, %v344
      %v349 = vcombine.low %v293, %v295
      %v350 = vcombine.low %v297, %v299
      %v352 = vunpack.c.l.s4 1983009808
      %v353 = vunpack.c.0.s8 %v352
      %v354 = vlaneseq
      %v355 = vshrl.u32 %v354, 7
      %v356 = vsub.s32 %v353, %v355
      %v357 = vrot.slane %v349, %v356
      %v359 = vunpack.c.l.s4 1983009808
      %v360 = vunpack.c.0.s8 %v359
      %v361 = vlaneseq
      %v362 = vshrl.u32 %v361, 7
      %v363 = vsub.s32 %v360, %v362
      %v364 = vrot.slane %v350, %v363
      %v365 = vcombine.low %v357, %v364
      %v366 = vcombine.high %v357, %v364
      %v373 = vsel %vm304, %v345, 0.0
      %v374 = vsel %vm304, %v346, 0.0
      %v375 = vsel %vm304, %v347, 0.0
      %v376 = vsel %vm304, %v348, 0.0
      %v377 = vsel %vm304, %v365, 0.0
      %v378 = vsel %vm304, %v366, 0.0
      %v379 = vadd.f32 %v373, 0.0
      %v380 = vadd.f32 %v374, 0.0
      %v381 = vadd.f32 %v375, 0.0
      %v382 = vadd.f32 %v376, 0.0
      %v383 = vadd.f32 %v377, 0.0
      %v384 = vadd.f32 %v378, 0.0
      %v385 = vld [vmem:[#allocation2] sm:$0xff]
      %v386 = vld [vmem:[#allocation2 + $0x8] sm:$0xff]
      %v387 = vld [vmem:[#allocation2 + $0x10] sm:$0xff]
      %v388 = vld [vmem:[#allocation2 + $0x18] sm:$0xff]
      %v389 = vld [vmem:[#allocation2 + $0x20] sm:$0xff]
      %v390 = vld [vmem:[#allocation2 + $0x28] sm:$0xff]
      %v391 = vmul.f32 %v379, %v385
      %v392 = vmul.f32 %v380, %v386
      %v393 = vmul.f32 %v381, %v387
      %v394 = vmul.f32 %v382, %v388
      %v395 = vmul.f32 %v383, %v389
      %v396 = vmul.f32 %v384, %v390
      %v397 = vadd.f32 %v391, %v392
      %v398 = vadd.f32 %v397, %v393
      %v399 = vadd.f32 %v398, %v394
      %v400 = vadd.f32 %v399, %v395
      %v401 = vadd.f32 %v400, %v396
      %402 = vadd.xlane.f32.xlu0 %v401
      %v403 = vpop.xlane.xlu0 %402
      %v404 = vrot.slane %v403, 4
      %v405 = vadd.f32 %v403, %v404
      %v406 = vrot.slane %v405, 2
      %v407 = vadd.f32 %v405, %v406
      %v408 = vrot.slane %v407, 1
      %v409 = vadd.f32 %v407, %v408
      %s410 = vtos %v409
      %s411 = scalar_lea.smem [#allocation8], 0
      %412 = sst [smem:[%s411]] %s410
    $region33: #{tpu_custom_call.1} parent=1 // pred_fallthru
      _
    // Predicated region
    $region34: #{tpu_custom_call.1} parent=1 // pred_check
      _
    $region35: #{tpu_custom_call.1} parent=1 // pred_check_branch
      %414 = sbr.rel (0) target = $region37
    $region36: #{tpu_custom_call.1} parent=1 // pred_region
      %s416 = ssub.s32 16, 16
      %417 = vsyncadd [#allocation4], %s416
      %420 = dma.smem_to_hbm [#allocation8], 16, %s3, [#allocation4]
    $region37: #{tpu_custom_call.1} parent=1 // pred_fallthru
      _
    // Predicated region
    $region38: #{tpu_custom_call.1} parent=1 // pred_check
      _
    $region39: #{tpu_custom_call.1} parent=1 // pred_check_branch
      %422 = sbr.rel (0) target = $region41
    $region40: #{tpu_custom_call.1} parent=1 // pred_region
      %423 = dma.done [#allocation4], 16
    $region41: #{tpu_custom_call.1} parent=1 // pred_fallthru
      _
    %424 = sfence
    %425 = vsyncpa [#allocation3], 1
    %426 = vsyncpa [#allocation6], 1
    %427 = vsyncpa [#allocation4], 1

</llo_original>
